<compile_context>
chip_gen: v6e
topology: v6e:2x2x1
jax: 0.10.0
libtpu: 0.0.40
codegen_flags: <defaults>
</compile_context>

<pallas_src>
import functools
import math

import jax
import jax.numpy as jnp
from jax.experimental import pallas as pl
from jax.experimental.pallas import tpu as pltpu


def _round_up(x: int, m: int) -> int:
    return ((x + m - 1) // m) * m


# ---------------------------------------------------------------------------
# Fused kernel
# ---------------------------------------------------------------------------
def _make_masknet_kernel(n_linear: int, hidden_true: int, hid_pad: int,
                         emit_probs: bool, eps: float = 1e-5):
    n_hidden = n_linear - 1
    inv_h = 1.0 / float(hidden_true)

    def kernel(x_ref, u_ref, *refs):
        # refs = (w0, b0, ..., w_{L-1}, b_{L-1}, m_ref[, p_ref])
        wb = refs[: 2 * n_linear]
        m_ref = refs[2 * n_linear]
        p_ref = refs[2 * n_linear + 1] if emit_probs else None

        tile_b = x_ref.shape[0]
        h = x_ref[...].astype(jnp.bfloat16)   # bf16 MXU input, f32 accumulation below

        lane_ok = None
        if n_hidden > 0 and hidden_true < hid_pad:
            lane_ok = (
                jax.lax.broadcasted_iota(jnp.int32, (tile_b, hid_pad), 1) < hidden_true
            )

        # Hidden blocks: Linear -> LayerNorm(no affine) -> ReLU.  Unrolled at trace time;
        # the running activation never leaves VMEM between layers.
        for li in range(n_hidden):
            w = wb[2 * li][...]          # bf16 (K[_pad], hid_pad)
            b = wb[2 * li + 1][...]      # f32  (1, hid_pad)
            z = jnp.dot(h, w, preferred_element_type=jnp.float32) + b
            # Padded lanes of z are exactly zero (padded weight cols / bias entries are 0),
            # so summing all lanes and dividing by the TRUE width gives the true mean.
            mean = jnp.sum(z, axis=-1, keepdims=True) * inv_h
            d = z - mean
            if lane_ok is not None:
                d = jnp.where(lane_ok, d, 0.0)   # two-pass variance over true lanes only
            var = jnp.sum(d * d, axis=-1, keepdims=True) * inv_h
            zn = d * jax.lax.rsqrt(var + eps)
            h = jnp.maximum(zn, 0.0).astype(jnp.bfloat16)   # padded lanes stay exactly 0

        # Final Linear -> sigmoid -> Bernoulli.
        w = wb[2 * n_hidden][...]
        b = wb[2 * n_hidden + 1][...]
        z = jnp.dot(h, w, preferred_element_type=jnp.float32) + b
        probs = 1.0 / (1.0 + jnp.exp(-z))
        if emit_probs:
            p_ref[...] = probs
        # Forward value of  bernoulli(p) - p.detach() + p  is exactly the sample.
        m_ref[...] = jnp.where(u_ref[...] < probs, 1.0, 0.0).astype(m_ref.dtype)

    return kernel


# ---------------------------------------------------------------------------
# One-time parameter preparation (hoisted out of the jitted forward)
# ---------------------------------------------------------------------------
def prepare_masknet_params(params):
    """Pad feature dims to 128 lanes and cast once: bf16 weights, f32 biases.
    Layer-0 K is kept at the true input width (x is passed unpadded)."""
    n_linear = len(params)
    hidden = params[0][0].shape[1]
    out_dim = params[-1][0].shape[1]
    hid_pad = _round_up(hidden, 128)
    out_pad = _round_up(out_dim, 128)

    flat = []
    for li, (w, b) in enumerate(params):
        k_true, n_true = w.shape
        k_pad = k_true if li == 0 else hid_pad
        n_pad = out_pad if li == n_linear - 1 else hid_pad
        w_p = jnp.pad(
            jnp.asarray(w, jnp.float32),
            ((0, k_pad - k_true), (0, n_pad - n_true)),
        ).astype(jnp.bfloat16)
        b_p = jnp.pad(jnp.asarray(b, jnp.float32), (0, n_pad - n_true)).reshape(1, n_pad)
        flat += [w_p, b_p]

    meta = dict(n_linear=n_linear, in_dim=params[0][0].shape[0], hidden=hidden,
                out_dim=out_dim, hid_pad=hid_pad, out_pad=out_pad)
    return tuple(flat), meta


# ---------------------------------------------------------------------------
# Jitted forward
# ---------------------------------------------------------------------------
@functools.partial(
    jax.jit,
    static_argnames=("n_linear", "hidden", "out_dim", "hid_pad", "out_pad",
                     "tile_b", "return_probs"),
)
def _masknet_forward_jit(key, x, flat_wb, *, n_linear, hidden, out_dim,
                         hid_pad, out_pad, tile_b, return_probs):
    batch, in_dim = x.shape
    b_pad = _round_up(batch, tile_b)
    x = x.astype(jnp.float32)
    if b_pad != batch:
        x = jnp.pad(x, ((0, b_pad - batch), (0, 0)))
    # Uniform noise for Bernoulli sampling (works on TPU and in interpret mode).
    u = jax.random.uniform(key, (b_pad, out_pad), jnp.float32)
    grid = (b_pad // tile_b,)

    resident = pl.Buffered(1)   # constant block index -> single VMEM buffer is enough
    in_specs = [
        pl.BlockSpec((tile_b, in_dim), lambda i: (i, 0)),     # full (unpadded) last dim
        pl.BlockSpec((tile_b, out_pad), lambda i: (i, 0)),
    ]
    for a in flat_wb:
        in_specs.append(pl.BlockSpec(a.shape, lambda i: (0, 0), pipeline_mode=resident))

    m_spec = pl.BlockSpec((tile_b, out_pad), lambda i: (i, 0))
    m_shape = jax.ShapeDtypeStruct((b_pad, out_pad), jnp.float32)
    if return_probs:
        out_specs = (m_spec, pl.BlockSpec((tile_b, out_pad), lambda i: (i, 0)))
        out_shape = (m_shape, jax.ShapeDtypeStruct((b_pad, out_pad), jnp.float32))
    else:
        out_specs = m_spec
        out_shape = m_shape

    # Advisory cost estimate.
    flops = 0
    k = in_dim
    for li in range(n_linear):
        n = out_pad if li == n_linear - 1 else hid_pad
        flops += 2 * b_pad * k * n
        k = hid_pad
    transcendentals = b_pad * (out_pad + (n_linear - 1))
    weight_bytes = sum(int(a.size) * a.dtype.itemsize for a in flat_wb)
    io_bytes = (b_pad * in_dim * 4 + b_pad * out_pad * 4
                + (2 if return_probs else 1) * b_pad * out_pad * 4)

    # Explicit VMEM budget: single-buffered resident weights + double-buffered tiles + temps.
    tile_bytes = tile_b * (in_dim + out_pad * (3 if return_probs else 2)) * 4
    temps = 6 * tile_b * max(hid_pad, out_pad) * 4
    footprint = weight_bytes + 2 * tile_bytes + temps
    vmem_limit = int(min(max(footprint + (8 << 20), 32 << 20), 60 << 20))

    kernel = _make_masknet_kernel(n_linear, hidden, hid_pad, return_probs)

    out = pl.pallas_call(
        kernel,
        grid=grid,
        in_specs=in_specs,
        out_specs=out_specs,
        out_shape=out_shape,
        compiler_params=pltpu.CompilerParams(
            dimension_semantics=("parallel",),   # shard batch tiles across TCs on v7x
            vmem_limit_bytes=vmem_limit,
        ),
        cost_estimate=pl.CostEstimate(
            flops=flops,
            transcendentals=transcendentals,
            bytes_accessed=weight_bytes + io_bytes,
        ),
    )(x, u, *flat_wb)

    if return_probs:
        m_pad, p_pad = out
        return m_pad[:batch, :out_dim], p_pad[:batch, :out_dim]
    return out[:batch, :out_dim]


def masknet_forward(key, x, prepared, *, tile_b=512, return_probs=False,
                    min_batch_tiles=2):
    """User-facing forward.  `prepared` comes from prepare_masknet_params(params)."""
    flat_wb, meta = prepared
    batch = x.shape[0]
    b8 = _round_up(max(batch, 1), 8)
    # Clamp to the batch, force a multiple of 8 (block constraint / sublane packing).
    tb = _round_up(max(8, min(int(tile_b), b8)), 8)
    # Ensure >= min_batch_tiles grid steps when batch allows (megacore on v7x).
    if -(-b8 // tb) < min_batch_tiles and b8 >= 8 * min_batch_tiles:
        tb = _round_up(-(-b8 // min_batch_tiles), 8)
    return _masknet_forward_jit(
        key, x, flat_wb,
        n_linear=meta["n_linear"], hidden=meta["hidden"], out_dim=meta["out_dim"],
        hid_pad=meta["hid_pad"], out_pad=meta["out_pad"],
        tile_b=tb, return_probs=return_probs,
    )


# ---------------------------------------------------------------------------
# Parameter init (nn.Linear-style; weights stored as (in, out))
# ---------------------------------------------------------------------------
def init_mlp_params(key, input_dim, hidden_dim, output_dim, n_layers):
    dims = [input_dim] + [hidden_dim] * n_layers + [output_dim]
    params = []
    for i in range(len(dims) - 1):
        key, kw, kb = jax.random.split(key, 3)
        bound = 1.0 / math.sqrt(dims[i])
        w = jax.random.uniform(kw, (dims[i], dims[i + 1]), jnp.float32, -bound, bound)
        b = jax.random.uniform(kb, (dims[i + 1],), jnp.float32, -bound, bound)
        params.append((w, b))
    return tuple(params)


# ---------------------------------------------------------------------------
# Pure-JAX reference (deterministic part: p = sigmoid(MLP(x)))
# ---------------------------------------------------------------------------
def masknet_probs_reference(x, params):
    h = x
    n = len(params)
    for i, (w, b) in enumerate(params):
        h = h @ w + b
        if i < n - 1:
            mean = jnp.mean(h, axis=-1, keepdims=True)
            var = jnp.mean((h - mean) ** 2, axis=-1, keepdims=True)
            h = (h - mean) * jax.lax.rsqrt(var + 1e-5)
            h = jnp.maximum(h, 0.0)
    return jax.nn.sigmoid(h)


if __name__ == "__main__":
    key = jax.random.PRNGKey(0)

    batch = 64
    input_dim = 32
    hidden_dim = 32
    output_dim = 16
    n_layers = 3  # -> 3 (Linear+LN+ReLU) blocks + final Linear

    key, kx, kp, kb = jax.random.split(key, 4)
    x = jax.random.normal(kx, (batch, input_dim), jnp.float32)
    params = init_mlp_params(kp, input_dim, hidden_dim, output_dim, n_layers)
    prepared = prepare_masknet_params(params)   # pad/cast once, outside the jitted forward

    # Validation path (also returns probs); tile_b auto-caps to 32 -> 2 batch tiles.
    m, probs = masknet_forward(kb, x, prepared, return_probs=True)
    m, probs = jax.block_until_ready((m, probs))
    assert m.shape == (batch, output_dim)
    assert probs.shape == (batch, output_dim)

    # Deterministic path check (probs) against f32 reference; bf16 MXU -> loosened tolerance.
    ref_p = masknet_probs_reference(x, params)
    assert jnp.allclose(probs, ref_p, atol=3e-2, rtol=3e-2), "prob mismatch vs reference"

    # Stochastic path: forward values must be exactly {0, 1}.
    assert bool(jnp.all((m == 0.0) | (m == 1.0))), "mask values not in {0,1}"

    # Fast path (mask only, no probs writeback).
    m2 = jax.block_until_ready(masknet_forward(kb, x, prepared))
    assert m2.shape == (batch, output_dim)
    assert bool(jnp.all((m2 == 0.0) | (m2 == 1.0)))

    print("KERNEL_OK")
</pallas_src>

<mosaic_0001>
module attributes {stable_mosaic.version = 11 : i64} {
  func.func @kernel(%arg0: i32, %arg1: memref<32x32xf32, #tpu.memory_space<vmem>>, %arg2: memref<32x128xf32, #tpu.memory_space<vmem>>, %arg3: memref<32x128xbf16, #tpu.memory_space<vmem>>, %arg4: memref<1x128xf32, #tpu.memory_space<vmem>>, %arg5: memref<128x128xbf16, #tpu.memory_space<vmem>>, %arg6: memref<1x128xf32, #tpu.memory_space<vmem>>, %arg7: memref<128x128xbf16, #tpu.memory_space<vmem>>, %arg8: memref<1x128xf32, #tpu.memory_space<vmem>>, %arg9: memref<128x128xbf16, #tpu.memory_space<vmem>>, %arg10: memref<1x128xf32, #tpu.memory_space<vmem>>, %arg11: memref<32x128xf32, #tpu.memory_space<vmem>>, %arg12: memref<32x128xf32, #tpu.memory_space<vmem>>) attributes {dimension_semantics = [#tpu.dimension_semantics<parallel>], iteration_bounds = array<i64: 2>, scalar_prefetch = 0 : i64, scratch_operands = 0 : i64, tpu.core_type = #tpu.core_type<tc>, window_params = [{transform_indices = @transform_0, window_bounds = array<i64: 32, 32>}, {transform_indices = @transform_1, window_bounds = array<i64: 32, 128>}, {pipeline_mode = #tpu.pipeline_mode<synchronous>, transform_indices = @transform_2, window_bounds = array<i64: 32, 128>}, {pipeline_mode = #tpu.pipeline_mode<synchronous>, transform_indices = @transform_3, window_bounds = array<i64: 1, 128>}, {pipeline_mode = #tpu.pipeline_mode<synchronous>, transform_indices = @transform_4, window_bounds = array<i64: 128, 128>}, {pipeline_mode = #tpu.pipeline_mode<synchronous>, transform_indices = @transform_5, window_bounds = array<i64: 1, 128>}, {pipeline_mode = #tpu.pipeline_mode<synchronous>, transform_indices = @transform_6, window_bounds = array<i64: 128, 128>}, {pipeline_mode = #tpu.pipeline_mode<synchronous>, transform_indices = @transform_7, window_bounds = array<i64: 1, 128>}, {pipeline_mode = #tpu.pipeline_mode<synchronous>, transform_indices = @transform_8, window_bounds = array<i64: 128, 128>}, {pipeline_mode = #tpu.pipeline_mode<synchronous>, transform_indices = @transform_9, window_bounds = array<i64: 1, 128>}, {transform_indices = @transform_10, window_bounds = array<i64: 32, 128>}, {transform_indices = @transform_11, window_bounds = array<i64: 32, 128>}]} {
    %c0 = arith.constant 0 : index
    %c0_0 = arith.constant 0 : index
    %0 = vector.load %arg1[%c0, %c0_0] : memref<32x32xf32, #tpu.memory_space<vmem>>, vector<32x32xf32>
    %1 = arith.truncf %0 : vector<32x32xf32> to vector<32x32xbf16>
    %2 = tpu.iota {dimensions = array<i32: 1>} : vector<32x128xi32>
    %c32_i32 = arith.constant 32 : i32
    %3 = vector.broadcast %c32_i32 : i32 to vector<32x128xi32>
    %4 = arith.cmpi slt, %2, %3 : vector<32x128xi32>
    %c0_1 = arith.constant 0 : index
    %c0_2 = arith.constant 0 : index
    %5 = vector.load %arg3[%c0_1, %c0_2] : memref<32x128xbf16, #tpu.memory_space<vmem>>, vector<32x128xbf16>
    %c0_3 = arith.constant 0 : index
    %c0_4 = arith.constant 0 : index
    %6 = vector.load %arg4[%c0_3, %c0_4] : memref<1x128xf32, #tpu.memory_space<vmem>>, vector<1x128xf32>
    %cst = arith.constant dense<0.000000e+00> : vector<32x128xf32>
    %7 = tpu.matmul %1, %5, %cst {dimension_numbers = #tpu.dot_dimension_numbers<[1], [0], [0], [1], [0, 0, 1, 1], [], []>} : vector<32x32xbf16>, vector<32x128xbf16>, vector<32x128xf32> -> vector<32x128xf32>
    %8 = vector.broadcast %6 : vector<1x128xf32> to vector<32x128xf32>
    %9 = arith.addf %7, %8 : vector<32x128xf32>
    %cst_5 = arith.constant dense<0.000000e+00> : vector<32xf32>
    %10 = vector.multi_reduction <add>, %9, %cst_5 [1] : vector<32x128xf32> to vector<32xf32>
    %11 = vector.shape_cast %10 : vector<32xf32> to vector<32x1xf32>
    %cst_6 = arith.constant 3.125000e-02 : f32
    %12 = vector.broadcast %cst_6 : f32 to vector<32x1xf32>
    %13 = arith.mulf %11, %12 : vector<32x1xf32>
    %14 = vector.broadcast %13 : vector<32x1xf32> to vector<32x128xf32>
    %15 = arith.subf %9, %14 : vector<32x128xf32>
    %cst_7 = arith.constant 0.000000e+00 : f32
    %16 = vector.broadcast %cst_7 : f32 to vector<32x128xf32>
    %17 = arith.select %4, %15, %16 : vector<32x128xi1>, vector<32x128xf32>
    %18 = arith.mulf %17, %17 : vector<32x128xf32>
    %cst_8 = arith.constant dense<0.000000e+00> : vector<32xf32>
    %19 = vector.multi_reduction <add>, %18, %cst_8 [1] : vector<32x128xf32> to vector<32xf32>
    %20 = vector.shape_cast %19 : vector<32xf32> to vector<32x1xf32>
    %cst_9 = arith.constant 3.125000e-02 : f32
    %21 = vector.broadcast %cst_9 : f32 to vector<32x1xf32>
    %22 = arith.mulf %20, %21 : vector<32x1xf32>
    %cst_10 = arith.constant 9.99999974E-6 : f32
    %23 = vector.broadcast %cst_10 : f32 to vector<32x1xf32>
    %24 = arith.addf %22, %23 : vector<32x1xf32>
    %25 = math.rsqrt %24 : vector<32x1xf32>
    %26 = vector.broadcast %25 : vector<32x1xf32> to vector<32x128xf32>
    %27 = arith.mulf %17, %26 : vector<32x128xf32>
    %cst_11 = arith.constant 0.000000e+00 : f32
    %28 = vector.broadcast %cst_11 : f32 to vector<32x128xf32>
    %29 = arith.maximumf %27, %28 : vector<32x128xf32>
    %30 = arith.truncf %29 : vector<32x128xf32> to vector<32x128xbf16>
    %c0_12 = arith.constant 0 : index
    %c0_13 = arith.constant 0 : index
    %31 = vector.load %arg5[%c0_12, %c0_13] : memref<128x128xbf16, #tpu.memory_space<vmem>>, vector<128x128xbf16>
    %c0_14 = arith.constant 0 : index
    %c0_15 = arith.constant 0 : index
    %32 = vector.load %arg6[%c0_14, %c0_15] : memref<1x128xf32, #tpu.memory_space<vmem>>, vector<1x128xf32>
    %cst_16 = arith.constant dense<0.000000e+00> : vector<32x128xf32>
    %33 = tpu.matmul %30, %31, %cst_16 {dimension_numbers = #tpu.dot_dimension_numbers<[1], [0], [0], [1], [0, 0, 1, 1], [], []>} : vector<32x128xbf16>, vector<128x128xbf16>, vector<32x128xf32> -> vector<32x128xf32>
    %34 = vector.broadcast %32 : vector<1x128xf32> to vector<32x128xf32>
    %35 = arith.addf %33, %34 : vector<32x128xf32>
    %cst_17 = arith.constant dense<0.000000e+00> : vector<32xf32>
    %36 = vector.multi_reduction <add>, %35, %cst_17 [1] : vector<32x128xf32> to vector<32xf32>
    %37 = vector.shape_cast %36 : vector<32xf32> to vector<32x1xf32>
    %cst_18 = arith.constant 3.125000e-02 : f32
    %38 = vector.broadcast %cst_18 : f32 to vector<32x1xf32>
    %39 = arith.mulf %37, %38 : vector<32x1xf32>
    %40 = vector.broadcast %39 : vector<32x1xf32> to vector<32x128xf32>
    %41 = arith.subf %35, %40 : vector<32x128xf32>
    %cst_19 = arith.constant 0.000000e+00 : f32
    %42 = vector.broadcast %cst_19 : f32 to vector<32x128xf32>
    %43 = arith.select %4, %41, %42 : vector<32x128xi1>, vector<32x128xf32>
    %44 = arith.mulf %43, %43 : vector<32x128xf32>
    %cst_20 = arith.constant dense<0.000000e+00> : vector<32xf32>
    %45 = vector.multi_reduction <add>, %44, %cst_20 [1] : vector<32x128xf32> to vector<32xf32>
    %46 = vector.shape_cast %45 : vector<32xf32> to vector<32x1xf32>
    %cst_21 = arith.constant 3.125000e-02 : f32
    %47 = vector.broadcast %cst_21 : f32 to vector<32x1xf32>
    %48 = arith.mulf %46, %47 : vector<32x1xf32>
    %cst_22 = arith.constant 9.99999974E-6 : f32
    %49 = vector.broadcast %cst_22 : f32 to vector<32x1xf32>
    %50 = arith.addf %48, %49 : vector<32x1xf32>
    %51 = math.rsqrt %50 : vector<32x1xf32>
    %52 = vector.broadcast %51 : vector<32x1xf32> to vector<32x128xf32>
    %53 = arith.mulf %43, %52 : vector<32x128xf32>
    %cst_23 = arith.constant 0.000000e+00 : f32
    %54 = vector.broadcast %cst_23 : f32 to vector<32x128xf32>
    %55 = arith.maximumf %53, %54 : vector<32x128xf32>
    %56 = arith.truncf %55 : vector<32x128xf32> to vector<32x128xbf16>
    %c0_24 = arith.constant 0 : index
    %c0_25 = arith.constant 0 : index
    %57 = vector.load %arg7[%c0_24, %c0_25] : memref<128x128xbf16, #tpu.memory_space<vmem>>, vector<128x128xbf16>
    %c0_26 = arith.constant 0 : index
    %c0_27 = arith.constant 0 : index
    %58 = vector.load %arg8[%c0_26, %c0_27] : memref<1x128xf32, #tpu.memory_space<vmem>>, vector<1x128xf32>
    %cst_28 = arith.constant dense<0.000000e+00> : vector<32x128xf32>
    %59 = tpu.matmul %56, %57, %cst_28 {dimension_numbers = #tpu.dot_dimension_numbers<[1], [0], [0], [1], [0, 0, 1, 1], [], []>} : vector<32x128xbf16>, vector<128x128xbf16>, vector<32x128xf32> -> vector<32x128xf32>
    %60 = vector.broadcast %58 : vector<1x128xf32> to vector<32x128xf32>
    %61 = arith.addf %59, %60 : vector<32x128xf32>
    %cst_29 = arith.constant dense<0.000000e+00> : vector<32xf32>
    %62 = vector.multi_reduction <add>, %61, %cst_29 [1] : vector<32x128xf32> to vector<32xf32>
    %63 = vector.shape_cast %62 : vector<32xf32> to vector<32x1xf32>
    %cst_30 = arith.constant 3.125000e-02 : f32
    %64 = vector.broadcast %cst_30 : f32 to vector<32x1xf32>
    %65 = arith.mulf %63, %64 : vector<32x1xf32>
    %66 = vector.broadcast %65 : vector<32x1xf32> to vector<32x128xf32>
    %67 = arith.subf %61, %66 : vector<32x128xf32>
    %cst_31 = arith.constant 0.000000e+00 : f32
    %68 = vector.broadcast %cst_31 : f32 to vector<32x128xf32>
    %69 = arith.select %4, %67, %68 : vector<32x128xi1>, vector<32x128xf32>
    %70 = arith.mulf %69, %69 : vector<32x128xf32>
    %cst_32 = arith.constant dense<0.000000e+00> : vector<32xf32>
    %71 = vector.multi_reduction <add>, %70, %cst_32 [1] : vector<32x128xf32> to vector<32xf32>
    %72 = vector.shape_cast %71 : vector<32xf32> to vector<32x1xf32>
    %cst_33 = arith.constant 3.125000e-02 : f32
    %73 = vector.broadcast %cst_33 : f32 to vector<32x1xf32>
    %74 = arith.mulf %72, %73 : vector<32x1xf32>
    %cst_34 = arith.constant 9.99999974E-6 : f32
    %75 = vector.broadcast %cst_34 : f32 to vector<32x1xf32>
    %76 = arith.addf %74, %75 : vector<32x1xf32>
    %77 = math.rsqrt %76 : vector<32x1xf32>
    %78 = vector.broadcast %77 : vector<32x1xf32> to vector<32x128xf32>
    %79 = arith.mulf %69, %78 : vector<32x128xf32>
    %cst_35 = arith.constant 0.000000e+00 : f32
    %80 = vector.broadcast %cst_35 : f32 to vector<32x128xf32>
    %81 = arith.maximumf %79, %80 : vector<32x128xf32>
    %82 = arith.truncf %81 : vector<32x128xf32> to vector<32x128xbf16>
    %c0_36 = arith.constant 0 : index
    %c0_37 = arith.constant 0 : index
    %83 = vector.load %arg9[%c0_36, %c0_37] : memref<128x128xbf16, #tpu.memory_space<vmem>>, vector<128x128xbf16>
    %c0_38 = arith.constant 0 : index
    %c0_39 = arith.constant 0 : index
    %84 = vector.load %arg10[%c0_38, %c0_39] : memref<1x128xf32, #tpu.memory_space<vmem>>, vector<1x128xf32>
    %cst_40 = arith.constant dense<0.000000e+00> : vector<32x128xf32>
    %85 = tpu.matmul %82, %83, %cst_40 {dimension_numbers = #tpu.dot_dimension_numbers<[1], [0], [0], [1], [0, 0, 1, 1], [], []>} : vector<32x128xbf16>, vector<128x128xbf16>, vector<32x128xf32> -> vector<32x128xf32>
    %86 = vector.broadcast %84 : vector<1x128xf32> to vector<32x128xf32>
    %87 = arith.addf %85, %86 : vector<32x128xf32>
    %cst_41 = arith.constant 0.000000e+00 : f32
    %88 = vector.broadcast %cst_41 : f32 to vector<32x128xf32>
    %89 = arith.subf %88, %87 : vector<32x128xf32>
    %90 = math.exp %89 : vector<32x128xf32>
    %cst_42 = arith.constant 1.000000e+00 : f32
    %91 = vector.broadcast %cst_42 : f32 to vector<32x128xf32>
    %92 = arith.addf %91, %90 : vector<32x128xf32>
    %cst_43 = arith.constant 1.000000e+00 : f32
    %93 = vector.broadcast %cst_43 : f32 to vector<32x128xf32>
    %94 = arith.divf %93, %92 : vector<32x128xf32>
    %c0_44 = arith.constant 0 : index
    %c0_45 = arith.constant 0 : index
    %95 = vector.load %arg12[%c0_44, %c0_45] : memref<32x128xf32, #tpu.memory_space<vmem>>, vector<32x128xf32>
    tpu.vector_store %arg12[%c0_44, %c0_45], %94 {strides = array<i32>} : memref<32x128xf32, #tpu.memory_space<vmem>>, vector<32x128xf32>,
    %c0_46 = arith.constant 0 : index
    %c0_47 = arith.constant 0 : index
    %96 = vector.load %arg2[%c0_46, %c0_47] : memref<32x128xf32, #tpu.memory_space<vmem>>, vector<32x128xf32>
    %97 = arith.cmpf olt, %96, %94 : vector<32x128xf32>
    %cst_48 = arith.constant 1.000000e+00 : f32
    %cst_49 = arith.constant 0.000000e+00 : f32
    %98 = vector.broadcast %cst_48 : f32 to vector<32x128xf32>
    %99 = vector.broadcast %cst_49 : f32 to vector<32x128xf32>
    %100 = arith.select %97, %98, %99 : vector<32x128xi1>, vector<32x128xf32>
    %c0_50 = arith.constant 0 : index
    %c0_51 = arith.constant 0 : index
    %101 = vector.load %arg11[%c0_50, %c0_51] : memref<32x128xf32, #tpu.memory_space<vmem>>, vector<32x128xf32>
    tpu.vector_store %arg11[%c0_50, %c0_51], %100 {strides = array<i32>} : memref<32x128xf32, #tpu.memory_space<vmem>>, vector<32x128xf32>,
    return
  }
  func.func @transform_0(%arg0: i32) -> (i32, i32) {
    %c0_i32 = arith.constant 0 : i32
    %c0_i32_0 = arith.constant 0 : i32
    return %arg0, %c0_i32 : i32, i32
  }
  func.func @transform_1(%arg0: i32) -> (i32, i32) {
    %c0_i32 = arith.constant 0 : i32
    %c0_i32_0 = arith.constant 0 : i32
    return %arg0, %c0_i32 : i32, i32
  }
  func.func @transform_2(%arg0: i32) -> (i32, i32) {
    %c0_i32 = arith.constant 0 : i32
    %c0_i32_0 = arith.constant 0 : i32
    %c0_i32_1 = arith.constant 0 : i32
    return %c0_i32, %c0_i32_0 : i32, i32
  }
  func.func @transform_3(%arg0: i32) -> (i32, i32) {
    %c0_i32 = arith.constant 0 : i32
    %c0_i32_0 = arith.constant 0 : i32
    %c0_i32_1 = arith.constant 0 : i32
    return %c0_i32, %c0_i32_0 : i32, i32
  }
  func.func @transform_4(%arg0: i32) -> (i32, i32) {
    %c0_i32 = arith.constant 0 : i32
    %c0_i32_0 = arith.constant 0 : i32
    %c0_i32_1 = arith.constant 0 : i32
    return %c0_i32, %c0_i32_0 : i32, i32
  }
  func.func @transform_5(%arg0: i32) -> (i32, i32) {
    %c0_i32 = arith.constant 0 : i32
    %c0_i32_0 = arith.constant 0 : i32
    %c0_i32_1 = arith.constant 0 : i32
    return %c0_i32, %c0_i32_0 : i32, i32
  }
  func.func @transform_6(%arg0: i32) -> (i32, i32) {
    %c0_i32 = arith.constant 0 : i32
    %c0_i32_0 = arith.constant 0 : i32
    %c0_i32_1 = arith.constant 0 : i32
    return %c0_i32, %c0_i32_0 : i32, i32
  }
  func.func @transform_7(%arg0: i32) -> (i32, i32) {
    %c0_i32 = arith.constant 0 : i32
    %c0_i32_0 = arith.constant 0 : i32
    %c0_i32_1 = arith.constant 0 : i32
    return %c0_i32, %c0_i32_0 : i32, i32
  }
  func.func @transform_8(%arg0: i32) -> (i32, i32) {
    %c0_i32 = arith.constant 0 : i32
    %c0_i32_0 = arith.constant 0 : i32
    %c0_i32_1 = arith.constant 0 : i32
    return %c0_i32, %c0_i32_0 : i32, i32
  }
  func.func @transform_9(%arg0: i32) -> (i32, i32) {
    %c0_i32 = arith.constant 0 : i32
    %c0_i32_0 = arith.constant 0 : i32
    %c0_i32_1 = arith.constant 0 : i32
    return %c0_i32, %c0_i32_0 : i32, i32
  }
  func.func @transform_10(%arg0: i32) -> (i32, i32) {
    %c0_i32 = arith.constant 0 : i32
    %c0_i32_0 = arith.constant 0 : i32
    return %arg0, %c0_i32 : i32, i32
  }
  func.func @transform_11(%arg0: i32) -> (i32, i32) {
    %c0_i32 = arith.constant 0 : i32
    %c0_i32_0 = arith.constant 0 : i32
    return %arg0, %c0_i32 : i32, i32
  }
}

</mosaic_0001>

<llo_original>
// kernel: _masknet_forward_jit.1
$region0: #{_masknet_forward_jit.1}
  #allocation0 [shape = 'u32[]', space=smem, size = 0x4, offset = 0x4, fixed_abs, tag = 'smem constant byte address 0x4 - core index']
  #allocation1 [shape = 'u32[144,128]{1,0:T(1,128)}', space=vmem, size = 0x12000, scoped, tag = 'internal scratch']
  %s0 = inlined_call_operand.vmem [shape: f32[64,32], index: 0, kind: input, shape index: {}]
  %s1 = inlined_call_operand.vmem [shape: f32[64,128], index: 1, kind: input, shape index: {}]
  %s2 = inlined_call_operand.hbm [shape: bf16[32,128], index: 2, kind: input, shape index: {}]
  %s3 = inlined_call_operand.vmem [shape: f32[1,128], index: 3, kind: input, shape index: {}]
  %s4 = inlined_call_operand.vmem [shape: bf16[128,128], index: 4, kind: input, shape index: {}]
  %s5 = inlined_call_operand.vmem [shape: f32[1,128], index: 5, kind: input, shape index: {}]
  %s6 = inlined_call_operand.vmem [shape: bf16[128,128], index: 6, kind: input, shape index: {}]
  %s7 = inlined_call_operand.vmem [shape: f32[1,128], index: 7, kind: input, shape index: {}]
  %s8 = inlined_call_operand.vmem [shape: bf16[128,128], index: 8, kind: input, shape index: {}]
  %s9 = inlined_call_operand.vmem [shape: f32[1,128], index: 9, kind: input, shape index: {}]
  %s10 = inlined_call_operand.vmem [shape: f32[64,128], index: 10, kind: output, shape index: {0}]
  %s11 = inlined_call_operand.vmem [shape: f32[64,128], index: 11, kind: output, shape index: {1}]
  %12 = xla_tuple %s10, %s11
  %s13 = sld [smem:[#allocation0]]
  $region85: #{_masknet_forward_jit.1} parent=0
    _
  %s15 = ssub.s32 1, %s13
  %s16 = scalar_select 0, %s15, %s13
  $region1: #{_masknet_forward_jit.1} parent=0
    #allocation2 [shape = 'u8[8192]{0}', space=vmem, size = 0x2000, scoped, tag = 'input window, operand 2, single buffered']
    #allocation3 [shape = 's32[2]{0}', space=sflag, size = 0x8, scoped, tag = 'scoped memory for _masknet_forward_jit.1']
    %17 = vsyncpa [#allocation3], 0
    loop: start=0, step=1, limit=4
    $region2: #{_masknet_forward_jit.1} parent=1 // loop_pre_header
      _
    $region3: #{_masknet_forward_jit.1} parent=1 // loop_header
      %s19 = sphi 0, %s23
      %p20 = scmp.ge.s32.totalorder %s19, 4
      %s29 = sphi 0, %s31
      %s32 = sphi 0, %s29
      %s33 = sphi 0, %s32
      %s49 = sphi 0, %s33
      %s55 = sphi 0, %s57
      %s58 = sphi 0, %s55
      %s59 = sphi 0, %s58
      %s75 = sphi 0, %s59
      %s79 = sphi 0, %s79
      %s81 = sphi 0, %s79
      %s82 = sphi 0, %s81
      %s96 = sphi 0, %s82
      %s100 = sphi 0, %s100
      %s102 = sphi 0, %s100
      %s103 = sphi 0, %s102
      %s117 = sphi 0, %s103
      %s121 = sphi 0, %s121
      %s123 = sphi 0, %s121
      %s124 = sphi 0, %s123
      %s138 = sphi 0, %s124
      %s142 = sphi 0, %s142
      %s144 = sphi 0, %s142
      %s145 = sphi 0, %s144
      %s159 = sphi 0, %s145
      %s163 = sphi 0, %s163
      %s165 = sphi 0, %s163
      %s166 = sphi 0, %s165
      %s180 = sphi 0, %s166
      %s184 = sphi 0, %s184
      %s186 = sphi 0, %s184
      %s187 = sphi 0, %s186
      %s201 = sphi 0, %s187
      %s205 = sphi 0, %s205
      %s207 = sphi 0, %s205
      %s208 = sphi 0, %s207
      %s222 = sphi 0, %s208
      %s226 = sphi 0, %s226
      %s228 = sphi 0, %s226
      %s229 = sphi 0, %s228
      %s243 = sphi 0, %s229
      %s249 = sphi 0, %s251
      %s252 = sphi 0, %s249
      %s253 = sphi 0, %s252
      %s269 = sphi 0, %s253
      %s275 = sphi 0, %s277
      %s278 = sphi 0, %s275
      %s279 = sphi 0, %s278
      %s295 = sphi 0, %s279
    $region4: #{_masknet_forward_jit.1} parent=1 // loop_header_branch
      %22 = sbr.rel (%p20) target = $region8
    $region5: #{_masknet_forward_jit.1} parent=1 // loop_body
      %s24 = ssub.s32 %s19, 1
      %s25 = ssub.s32 %s19, 2
      %s26 = sadd.s32 %s19, 1
      %s27 = ssub.s32 %s19, %s26
      %p28 = scmp.eq.s32.totalorder %s27, 0
      %s30 = sadd.s32 %s29, 1
      %s31 = scalar_select %p28, %s29, %s30
      %p34 = pneg %p28
      %p35 = scmp.eq.s32.totalorder %s19, 1
      %p36 = por %p34, %p35
      %p37 = scmp.ne.s32.totalorder %s29, %s32
      %p38 = scmp.eq.s32.totalorder %s19, 0
      %p39 = por %p37, %p38
      %p40 = scmp.ne.s32.totalorder %s29, %s32
      %p41 = scmp.eq.s32.totalorder %s24, 1
      %p42 = por %p40, %p41
      %p43 = scmp.ne.s32.totalorder %s32, %s33
      %p44 = scmp.eq.s32.totalorder %s24, 0
      %p45 = por %p43, %p44
      %p46 = scmp.ne.s32.totalorder %s32, %s33
      %p47 = scmp.eq.s32.totalorder %s25, 1
      %p48 = por %p46, %p47
      %p50 = scmp.ne.s32.totalorder %s33, %s49
      %p51 = scmp.eq.s32.totalorder %s25, 0
      %p52 = por %p50, %p51
      %s53 = ssub.s32 %s19, %s26
      %p54 = scmp.eq.s32.totalorder %s53, 0
      %s56 = sadd.s32 %s55, 1
      %s57 = scalar_select %p54, %s55, %s56
      %p60 = pneg %p54
      %p61 = scmp.eq.s32.totalorder %s19, 1
      %p62 = por %p60, %p61
      %p63 = scmp.ne.s32.totalorder %s55, %s58
      %p64 = scmp.eq.s32.totalorder %s19, 0
      %p65 = por %p63, %p64
      %p66 = scmp.ne.s32.totalorder %s55, %s58
      %p67 = scmp.eq.s32.totalorder %s24, 1
      %p68 = por %p66, %p67
      %p69 = scmp.ne.s32.totalorder %s58, %s59
      %p70 = scmp.eq.s32.totalorder %s24, 0
      %p71 = por %p69, %p70
      %p72 = scmp.ne.s32.totalorder %s58, %s59
      %p73 = scmp.eq.s32.totalorder %s25, 1
      %p74 = por %p72, %p73
      %p76 = scmp.ne.s32.totalorder %s59, %s75
      %p77 = scmp.eq.s32.totalorder %s25, 0
      %p78 = por %p76, %p77
      %s80 = sadd.s32 %s79, 1
      %p83 = scmp.eq.s32.totalorder %s19, 1
      %p84 = scmp.ne.s32.totalorder %s79, %s81
      %p85 = scmp.eq.s32.totalorder %s19, 0
      %p86 = por %p84, %p85
      %p87 = scmp.ne.s32.totalorder %s79, %s81
      %p88 = scmp.eq.s32.totalorder %s24, 1
      %p89 = por %p87, %p88
      %p90 = scmp.ne.s32.totalorder %s81, %s82
      %p91 = scmp.eq.s32.totalorder %s24, 0
      %p92 = por %p90, %p91
      %p93 = scmp.ne.s32.totalorder %s81, %s82
      %p94 = scmp.eq.s32.totalorder %s25, 1
      %p95 = por %p93, %p94
      %p97 = scmp.ne.s32.totalorder %s82, %s96
      %p98 = scmp.eq.s32.totalorder %s25, 0
      %p99 = por %p97, %p98
      %s101 = sadd.s32 %s100, 1
      %p104 = scmp.eq.s32.totalorder %s19, 1
      %p105 = scmp.ne.s32.totalorder %s100, %s102
      %p106 = scmp.eq.s32.totalorder %s19, 0
      %p107 = por %p105, %p106
      %p108 = scmp.ne.s32.totalorder %s100, %s102
      %p109 = scmp.eq.s32.totalorder %s24, 1
      %p110 = por %p108, %p109
      %p111 = scmp.ne.s32.totalorder %s102, %s103
      %p112 = scmp.eq.s32.totalorder %s24, 0
      %p113 = por %p111, %p112
      %p114 = scmp.ne.s32.totalorder %s102, %s103
      %p115 = scmp.eq.s32.totalorder %s25, 1
      %p116 = por %p114, %p115
      %p118 = scmp.ne.s32.totalorder %s103, %s117
      %p119 = scmp.eq.s32.totalorder %s25, 0
      %p120 = por %p118, %p119
      %s122 = sadd.s32 %s121, 1
      %p125 = scmp.eq.s32.totalorder %s19, 1
      %p126 = scmp.ne.s32.totalorder %s121, %s123
      %p127 = scmp.eq.s32.totalorder %s19, 0
      %p128 = por %p126, %p127
      %p129 = scmp.ne.s32.totalorder %s121, %s123
      %p130 = scmp.eq.s32.totalorder %s24, 1
      %p131 = por %p129, %p130
      %p132 = scmp.ne.s32.totalorder %s123, %s124
      %p133 = scmp.eq.s32.totalorder %s24, 0
      %p134 = por %p132, %p133
      %p135 = scmp.ne.s32.totalorder %s123, %s124
      %p136 = scmp.eq.s32.totalorder %s25, 1
      %p137 = por %p135, %p136
      %p139 = scmp.ne.s32.totalorder %s124, %s138
      %p140 = scmp.eq.s32.totalorder %s25, 0
      %p141 = por %p139, %p140
      %s143 = sadd.s32 %s142, 1
      %p146 = scmp.eq.s32.totalorder %s19, 1
      %p147 = scmp.ne.s32.totalorder %s142, %s144
      %p148 = scmp.eq.s32.totalorder %s19, 0
      %p149 = por %p147, %p148
      %p150 = scmp.ne.s32.totalorder %s142, %s144
      %p151 = scmp.eq.s32.totalorder %s24, 1
      %p152 = por %p150, %p151
      %p153 = scmp.ne.s32.totalorder %s144, %s145
      %p154 = scmp.eq.s32.totalorder %s24, 0
      %p155 = por %p153, %p154
      %p156 = scmp.ne.s32.totalorder %s144, %s145
      %p157 = scmp.eq.s32.totalorder %s25, 1
      %p158 = por %p156, %p157
      %p160 = scmp.ne.s32.totalorder %s145, %s159
      %p161 = scmp.eq.s32.totalorder %s25, 0
      %p162 = por %p160, %p161
      %s164 = sadd.s32 %s163, 1
      %p167 = scmp.eq.s32.totalorder %s19, 1
      %p168 = scmp.ne.s32.totalorder %s163, %s165
      %p169 = scmp.eq.s32.totalorder %s19, 0
      %p170 = por %p168, %p169
      %p171 = scmp.ne.s32.totalorder %s163, %s165
      %p172 = scmp.eq.s32.totalorder %s24, 1
      %p173 = por %p171, %p172
      %p174 = scmp.ne.s32.totalorder %s165, %s166
      %p175 = scmp.eq.s32.totalorder %s24, 0
      %p176 = por %p174, %p175
      %p177 = scmp.ne.s32.totalorder %s165, %s166
      %p178 = scmp.eq.s32.totalorder %s25, 1
      %p179 = por %p177, %p178
      %p181 = scmp.ne.s32.totalorder %s166, %s180
      %p182 = scmp.eq.s32.totalorder %s25, 0
      %p183 = por %p181, %p182
      %s185 = sadd.s32 %s184, 1
      %p188 = scmp.eq.s32.totalorder %s19, 1
      %p189 = scmp.ne.s32.totalorder %s184, %s186
      %p190 = scmp.eq.s32.totalorder %s19, 0
      %p191 = por %p189, %p190
      %p192 = scmp.ne.s32.totalorder %s184, %s186
      %p193 = scmp.eq.s32.totalorder %s24, 1
      %p194 = por %p192, %p193
      %p195 = scmp.ne.s32.totalorder %s186, %s187
      %p196 = scmp.eq.s32.totalorder %s24, 0
      %p197 = por %p195, %p196
      %p198 = scmp.ne.s32.totalorder %s186, %s187
      %p199 = scmp.eq.s32.totalorder %s25, 1
      %p200 = por %p198, %p199
      %p202 = scmp.ne.s32.totalorder %s187, %s201
      %p203 = scmp.eq.s32.totalorder %s25, 0
      %p204 = por %p202, %p203
      %s206 = sadd.s32 %s205, 1
      %p209 = scmp.eq.s32.totalorder %s19, 1
      %p210 = scmp.ne.s32.totalorder %s205, %s207
      %p211 = scmp.eq.s32.totalorder %s19, 0
      %p212 = por %p210, %p211
      %p213 = scmp.ne.s32.totalorder %s205, %s207
      %p214 = scmp.eq.s32.totalorder %s24, 1
      %p215 = por %p213, %p214
      %p216 = scmp.ne.s32.totalorder %s207, %s208
      %p217 = scmp.eq.s32.totalorder %s24, 0
      %p218 = por %p216, %p217
      %p219 = scmp.ne.s32.totalorder %s207, %s208
      %p220 = scmp.eq.s32.totalorder %s25, 1
      %p221 = por %p219, %p220
      %p223 = scmp.ne.s32.totalorder %s208, %s222
      %p224 = scmp.eq.s32.totalorder %s25, 0
      %p225 = por %p223, %p224
      %s227 = sadd.s32 %s226, 1
      %p230 = scmp.eq.s32.totalorder %s19, 1
      %p231 = scmp.ne.s32.totalorder %s226, %s228
      %p232 = scmp.eq.s32.totalorder %s19, 0
      %p233 = por %p231, %p232
      %p234 = scmp.ne.s32.totalorder %s226, %s228
      %p235 = scmp.eq.s32.totalorder %s24, 1
      %p236 = por %p234, %p235
      %p237 = scmp.ne.s32.totalorder %s228, %s229
      %p238 = scmp.eq.s32.totalorder %s24, 0
      %p239 = por %p237, %p238
      %p240 = scmp.ne.s32.totalorder %s228, %s229
      %p241 = scmp.eq.s32.totalorder %s25, 1
      %p242 = por %p240, %p241
      %p244 = scmp.ne.s32.totalorder %s229, %s243
      %p245 = scmp.eq.s32.totalorder %s25, 0
      %p246 = por %p244, %p245
      %s247 = ssub.s32 %s19, %s26
      %p248 = scmp.eq.s32.totalorder %s247, 0
      %s250 = sadd.s32 %s249, 1
      %s251 = scalar_select %p248, %s249, %s250
      %p254 = pneg %p248
      %p255 = scmp.eq.s32.totalorder %s19, 1
      %p256 = por %p254, %p255
      %p257 = scmp.ne.s32.totalorder %s249, %s252
      %p258 = scmp.eq.s32.totalorder %s19, 0
      %p259 = por %p257, %p258
      %p260 = scmp.ne.s32.totalorder %s249, %s252
      %p261 = scmp.eq.s32.totalorder %s24, 1
      %p262 = por %p260, %p261
      %p263 = scmp.ne.s32.totalorder %s252, %s253
      %p264 = scmp.eq.s32.totalorder %s24, 0
      %p265 = por %p263, %p264
      %p266 = scmp.ne.s32.totalorder %s252, %s253
      %p267 = scmp.eq.s32.totalorder %s25, 1
      %p268 = por %p266, %p267
      %p270 = scmp.ne.s32.totalorder %s253, %s269
      %p271 = scmp.eq.s32.totalorder %s25, 0
      %p272 = por %p270, %p271
      %s273 = ssub.s32 %s19, %s26
      %p274 = scmp.eq.s32.totalorder %s273, 0
      %s276 = sadd.s32 %s275, 1
      %s277 = scalar_select %p274, %s275, %s276
      %p280 = pneg %p274
      %p281 = scmp.eq.s32.totalorder %s19, 1
      %p282 = por %p280, %p281
      %p283 = scmp.ne.s32.totalorder %s275, %s278
      %p284 = scmp.eq.s32.totalorder %s19, 0
      %p285 = por %p283, %p284
      %p286 = scmp.ne.s32.totalorder %s275, %s278
      %p287 = scmp.eq.s32.totalorder %s24, 1
      %p288 = por %p286, %p287
      %p289 = scmp.ne.s32.totalorder %s278, %s279
      %p290 = scmp.eq.s32.totalorder %s24, 0
      %p291 = por %p289, %p290
      %p292 = scmp.ne.s32.totalorder %s278, %s279
      %p293 = scmp.eq.s32.totalorder %s25, 1
      %p294 = por %p292, %p293
      %p296 = scmp.ne.s32.totalorder %s279, %s295
      %p297 = scmp.eq.s32.totalorder %s25, 0
      %p298 = por %p296, %p297
      %p299 = scmp.le.s32.totalorder 1, %s19
      %p300 = scmp.lt.s32.totalorder %s19, 3
      %p301 = pnand %p299, %p300
      %p302 = pneg %p301
      // Predicated region
      $region9: #{_masknet_forward_jit.1} parent=5 // pred_check
        _
      $region10: #{_masknet_forward_jit.1} parent=5 // pred_check_branch
        %304 = sbr.rel (%p301) target = $region12
      $region11: #{_masknet_forward_jit.1} parent=5 // pred_region
        %s305 = ssub.s32 %s19, 1
        // Predicated region
        $region13: #{_masknet_forward_jit.1} parent=11 // pred_check
          %p306 = pneg %p92
        $region14: #{_masknet_forward_jit.1} parent=11 // pred_check_branch
          %308 = sbr.rel (%p306) target = $region16
        $region15: #{_masknet_forward_jit.1} parent=11 // pred_region
          %s310 = ssub.s32 256, 256
          %311 = vsyncadd [#allocation3], %s310
          %s312 = sshll.u32 [#allocation2], 4
          %s313 = int_to_ptr.vmem [resolvable:$true] %s312
          %318 = dma.hbm_to_vmem [thread:$0]  %s2, 256, %s313, [#allocation3], 64, 64, 4
        $region16: #{_masknet_forward_jit.1} parent=11 // pred_fallthru
          _
        // Predicated region
        $region17: #{_masknet_forward_jit.1} parent=11 // pred_check
          %p319 = pneg %p113
        $region18: #{_masknet_forward_jit.1} parent=11 // pred_check_branch
          %321 = sbr.rel (%p319) target = $region20
        $region19: #{_masknet_forward_jit.1} parent=11 // pred_region
          _
        $region20: #{_masknet_forward_jit.1} parent=11 // pred_fallthru
          _
        // Predicated region
        $region21: #{_masknet_forward_jit.1} parent=11 // pred_check
          %p322 = pneg %p134
        $region22: #{_masknet_forward_jit.1} parent=11 // pred_check_branch
          %324 = sbr.rel (%p322) target = $region24
        $region23: #{_masknet_forward_jit.1} parent=11 // pred_region
          _
        $region24: #{_masknet_forward_jit.1} parent=11 // pred_fallthru
          _
        // Predicated region
        $region25: #{_masknet_forward_jit.1} parent=11 // pred_check
          %p325 = pneg %p155
        $region26: #{_masknet_forward_jit.1} parent=11 // pred_check_branch
          %327 = sbr.rel (%p325) target = $region28
        $region27: #{_masknet_forward_jit.1} parent=11 // pred_region
          _
        $region28: #{_masknet_forward_jit.1} parent=11 // pred_fallthru
          _
        // Predicated region
        $region29: #{_masknet_forward_jit.1} parent=11 // pred_check
          %p328 = pneg %p176
        $region30: #{_masknet_forward_jit.1} parent=11 // pred_check_branch
          %330 = sbr.rel (%p328) target = $region32
        $region31: #{_masknet_forward_jit.1} parent=11 // pred_region
          _
        $region32: #{_masknet_forward_jit.1} parent=11 // pred_fallthru
          _
        // Predicated region
        $region33: #{_masknet_forward_jit.1} parent=11 // pred_check
          %p331 = pneg %p197
        $region34: #{_masknet_forward_jit.1} parent=11 // pred_check_branch
          %333 = sbr.rel (%p331) target = $region36
        $region35: #{_masknet_forward_jit.1} parent=11 // pred_region
          _
        $region36: #{_masknet_forward_jit.1} parent=11 // pred_fallthru
          _
        // Predicated region
        $region37: #{_masknet_forward_jit.1} parent=11 // pred_check
          %p334 = pneg %p218
        $region38: #{_masknet_forward_jit.1} parent=11 // pred_check_branch
          %336 = sbr.rel (%p334) target = $region40
        $region39: #{_masknet_forward_jit.1} parent=11 // pred_region
          _
        $region40: #{_masknet_forward_jit.1} parent=11 // pred_fallthru
          _
        // Predicated region
        $region41: #{_masknet_forward_jit.1} parent=11 // pred_check
          %p337 = pneg %p239
        $region42: #{_masknet_forward_jit.1} parent=11 // pred_check_branch
          %339 = sbr.rel (%p337) target = $region44
        $region43: #{_masknet_forward_jit.1} parent=11 // pred_region
          _
        $region44: #{_masknet_forward_jit.1} parent=11 // pred_fallthru
          _
      $region12: #{_masknet_forward_jit.1} parent=5 // pred_fallthru
        _
      %p340 = scmp.lt.s32.totalorder %s19, 2
      // Predicated region
      $region45: #{_masknet_forward_jit.1} parent=5 // pred_check
        %p341 = pneg %p340
      $region46: #{_masknet_forward_jit.1} parent=5 // pred_check_branch
        %343 = sbr.rel (%p341) target = $region48
      $region47: #{_masknet_forward_jit.1} parent=5 // pred_region
        // Predicated region
        $region49: #{_masknet_forward_jit.1} parent=47 // pred_check
          %p344 = pneg %p39
        $region50: #{_masknet_forward_jit.1} parent=47 // pred_check_branch
          %346 = sbr.rel (%p344) target = $region52
        $region51: #{_masknet_forward_jit.1} parent=47 // pred_region
          %s347 = smul.u32 4, %s19
          %p348 = scmp.lt.s32.totalorder %s347, 7
          %s349 = scalar_select %p348, %s347, 7
          %s350 = smul.addr %s349, 8
          %s351 = scalar_lea.vmem %s0, %s350
          %s352 = smul.u32 4, %s19
        $region52: #{_masknet_forward_jit.1} parent=47 // pred_fallthru
          _
        // Predicated region
        $region53: #{_masknet_forward_jit.1} parent=47 // pred_check
          %p353 = pneg %p65
        $region54: #{_masknet_forward_jit.1} parent=47 // pred_check_branch
          %355 = sbr.rel (%p353) target = $region56
        $region55: #{_masknet_forward_jit.1} parent=47 // pred_region
          %s356 = smul.u32 4, %s19
          %p357 = scmp.lt.s32.totalorder %s356, 7
          %s358 = scalar_select %p357, %s356, 7
          %s359 = smul.addr %s358, 8
          %s360 = scalar_lea.vmem %s1, %s359
          %s361 = smul.u32 4, %s19
        $region56: #{_masknet_forward_jit.1} parent=47 // pred_fallthru
          _
      $region48: #{_masknet_forward_jit.1} parent=5 // pred_fallthru
        _
      %p362 = scmp.le.s32.totalorder 1, %s19
      %p363 = scmp.lt.s32.totalorder %s19, 3
      %p364 = pnand %p362, %p363
      %p365 = pneg %p364
      // Predicated region
      $region57: #{_masknet_forward_jit.1} parent=5 // pred_check
        _
      $region58: #{_masknet_forward_jit.1} parent=5 // pred_check_branch
        %367 = sbr.rel (%p364) target = $region60
      $region59: #{_masknet_forward_jit.1} parent=5 // pred_region
        %s368 = ssub.s32 %s19, 1
        // Predicated region
        $region61: #{_masknet_forward_jit.1} parent=59 // pred_check
          %p369 = pneg %p92
        $region62: #{_masknet_forward_jit.1} parent=59 // pred_check_branch
          %371 = sbr.rel (%p369) target = $region64
        $region63: #{_masknet_forward_jit.1} parent=59 // pred_region
          %372 = dma.done [#allocation3], 256
        $region64: #{_masknet_forward_jit.1} parent=59 // pred_fallthru
          _
        %s373 = smul.u32 4, %s24
        %p374 = scmp.lt.s32.totalorder %s373, 7
        %s375 = scalar_select %p374, %s373, 7
        %s376 = smul.addr %s375, 8
        %s377 = scalar_lea.vmem %s0, %s376
        %p378 = pneg %p45
        %p379 = pneg %p42
        %s380 = smul.u32 4, %s24
        %p381 = scmp.lt.s32.totalorder %s380, 7
        %s382 = scalar_select %p381, %s380, 7
        %s383 = smul.addr %s382, 8
        %s384 = scalar_lea.vmem %s1, %s383
        %p385 = pneg %p71
        %p386 = pneg %p68
        %p387 = pneg %p92
        %p388 = pneg %p89
        %p389 = pneg %p113
        %p390 = pneg %p110
        %p391 = pneg %p134
        %p392 = pneg %p131
        %p393 = pneg %p155
        %p394 = pneg %p152
        %p395 = pneg %p176
        %p396 = pneg %p173
        %p397 = pneg %p197
        %p398 = pneg %p194
        %p399 = pneg %p218
        %p400 = pneg %p215
        %p401 = pneg %p239
        %p402 = pneg %p236
        %p403 = pneg %p265
        %p404 = pneg %p262
        %s405 = smul.u32 4, %s24
        %p406 = scmp.lt.s32.totalorder %s405, 7
        %s407 = scalar_select %p406, %s405, 7
        %s408 = smul.addr %s407, 8
        %s409 = scalar_lea.vmem %s10, %s408
        %p410 = pneg %p291
        %p411 = pneg %p288
        %s412 = smul.u32 4, %s24
        %p413 = scmp.lt.s32.totalorder %s412, 7
        %s414 = scalar_select %p413, %s412, 7
        %s415 = smul.addr %s414, 8
        %s416 = scalar_lea.vmem %s11, %s415
        %s417 = smul.u32 4, %s24
        %p418 = scmp.lt.s32.totalorder %s417, 7
        %s419 = scalar_select %p418, %s417, 7
        %s420 = smul.addr %s419, 8
        %s421 = scalar_lea.vmem %s0, %s420
        %s422 = smul.u32 4, %s24
        %s423 = smul.u32 4, %s24
        %p424 = scmp.lt.s32.totalorder %s423, 7
        %s425 = scalar_select %p424, %s423, 7
        %s426 = smul.addr %s425, 8
        %s427 = scalar_lea.vmem %s1, %s426
        %s428 = smul.u32 4, %s24
        %s429 = smul.u32 4, %s24
        %p430 = scmp.lt.s32.totalorder %s429, 7
        %s431 = scalar_select %p430, %s429, 7
        %s432 = smul.addr %s431, 8
        %s433 = scalar_lea.vmem %s10, %s432
        %s434 = smul.u32 4, %s24
        %s435 = smul.u32 4, %s24
        %p436 = scmp.lt.s32.totalorder %s435, 7
        %s437 = scalar_select %p436, %s435, 7
        %s438 = smul.addr %s437, 8
        %s439 = scalar_lea.vmem %s11, %s438
        %s440 = smul.u32 4, %s24
        %v442 = vld [vmem:[%s421] sm:$0xff]
        %v443 = vld [vmem:[%s421 + $0x8] sm:$0xff]
        %v444 = vld [vmem:[%s421 + $0x10] sm:$0xff]
        %v445 = vld [vmem:[%s421 + $0x18] sm:$0xff]
        %v446 = vpack.c.bf16 %v443, %v442
        %v447 = vpack.c.bf16 %v445, %v444
        %v448 = vlaneseq
        %v449 = vand.u32 %v448, 127
        %vm450 = vcmp.lt.s32.totalorder %v449, 32
        %v451 = vld [vmem:[#allocation2] sm:$0xf]
        %v452 = vld [vmem:[#allocation2 + $0x4] sm:$0xf]
        %v453 = vld [vmem:[#allocation2 + $0x8] sm:$0xf]
        %v454 = vld [vmem:[#allocation2 + $0xc] sm:$0xf]
        %v455 = vld [vmem:[%s3] sm:$0x1]
        %v457 = vlaneseq
        %v458 = vshrl.u32 %v457, 7
        %v459 = vsub.s32 0, %v458
        %v460 = vrot.slane %v455, %v459
        %v466 = vunpack.c.l.b16 %v451
        %v467 = vunpack.c.l.b16 %v452
        %v468 = vunpack.c.l.b16 %v453
        %v469 = vunpack.c.l.b16 %v454
        %v470 = vpack.c.b16 %v467, %v466
        %v471 = vpack.c.b16 %v469, %v468
        %vm474 = vcmask 261120
        %v476 = vsel %vm474, %v446, 0
        %v479 = vsel %vm474, %v447, 0
        %481 = vmatprep.subr.bf16.mxu0 0
        %482 = vmatpush1.bf16.msra.mxu0 0
        %483 = vmatprep.subr.bf16.mxu0 0
        %484 = vmatpush1.bf16.msra.mxu0 0
        %485 = vmatprep.subr.bf16.mxu0 0
        %486 = vmatpush1.bf16.msra.mxu0 0
        %487 = vmatprep.subr.bf16.mxu0 0
        %488 = vmatpush1.bf16.msra.mxu0 0
        %489 = vmatprep.subr.bf16.mxu0 0
        %490 = vmatpush1.bf16.msra.mxu0 0
        %491 = vmatprep.subr.bf16.mxu0 0
        %492 = vmatpush1.bf16.msra.mxu0 0
        %493 = vmatprep.subr.bf16.mxu0 0
        %494 = vmatpush1.bf16.msra.mxu0 %v471
        %495 = vmatprep.subr.bf16.mxu0 0
        %496 = vmatpush1.bf16.msra.mxu0 %v470
        %497 = vmatprep.subr.bf16.mxu0 0
        %498 = vmatpush2.bf16.msra.mxu0 0
        %499 = vmatprep.subr.bf16.mxu0 0
        %500 = vmatpush2.bf16.msra.mxu0 0
        %501 = vmatprep.subr.bf16.mxu0 0
        %502 = vmatpush2.bf16.msra.mxu0 0
        %503 = vmatprep.subr.bf16.mxu0 0
        %504 = vmatpush2.bf16.msra.mxu0 0
        %505 = vmatprep.subr.bf16.mxu0 0
        %506 = vmatpush2.bf16.msra.mxu0 0
        %507 = vmatprep.subr.bf16.mxu0 0
        %508 = vmatpush2.bf16.msra.mxu0 0
        %509 = vmatprep.subr.bf16.mxu0 0
        %510 = vmatpush2.bf16.msra.mxu0 0
        %511 = vmatprep.subr.bf16.mxu0 0
        %512 = vmatpush2.bf16.msra.mxu0 0
        %513 = vmatprep.mubr.bf16.mxu0 0
        %514 = vmatmul.mubr.bf16.gmra.mxu0 %v476
        %v515 = vpop.f32.mrf.mxu0
        %v516 = vadd.f32 %v460, %v515
        %v517 = vpop.f32.mrf.mxu0
        %v518 = vpop.f32.mrf.mxu0
        %v519 = vadd.f32 %v460, %v518
        %v520 = vpop.f32.mrf.mxu0
        %521 = vmatprep.mubr.bf16.mxu0 0
        %522 = vmatmul.mubr.bf16.gmra.mxu0 %v479
        %v523 = vpop.f32.mrf.mxu0
        %v524 = vadd.f32 %v460, %v523
        %v525 = vpop.f32.mrf.mxu0
        %v526 = vpop.f32.mrf.mxu0
        %v527 = vadd.f32 %v460, %v526
        %v528 = vpop.f32.mrf.mxu0
        %529 = vdwg.mxu0
        %530 = vadd.xlane.f32.xlu0 %v516
        %v531 = vpop.xlane.xlu0 %530
        %532 = vadd.xlane.f32.xlu0 %v519
        %v533 = vpop.xlane.xlu0 %532
        %534 = vadd.xlane.f32.xlu0 %v524
        %v535 = vpop.xlane.xlu0 %534
        %536 = vadd.xlane.f32.xlu0 %v527
        %v537 = vpop.xlane.xlu0 %536
        %v538 = vmul.f32 %v531, 0.03125
        %v539 = vmul.f32 %v533, 0.03125
        %v540 = vmul.f32 %v535, 0.03125
        %v541 = vmul.f32 %v537, 0.03125
        %v542 = vsub.f32 %v516, %v538
        %v543 = vsub.f32 %v519, %v539
        %v544 = vsub.f32 %v524, %v540
        %v545 = vsub.f32 %v527, %v541
        %v546 = vsel %vm450, %v542, 0.0
        %v547 = vsel %vm450, %v543, 0.0
        %v548 = vsel %vm450, %v544, 0.0
        %v549 = vsel %vm450, %v545, 0.0
        %v550 = vmul.f32 %v546, %v546
        %v551 = vmul.f32 %v547, %v547
        %v552 = vmul.f32 %v548, %v548
        %v553 = vmul.f32 %v549, %v549
        %554 = vadd.xlane.f32.xlu0 %v550
        %v555 = vpop.xlane.xlu0 %554
        %556 = vadd.xlane.f32.xlu0 %v551
        %v557 = vpop.xlane.xlu0 %556
        %558 = vadd.xlane.f32.xlu0 %v552
        %v559 = vpop.xlane.xlu0 %558
        %560 = vadd.xlane.f32.xlu0 %v553
        %v561 = vpop.xlane.xlu0 %560
        %v562 = vmul.f32 %v555, 0.03125
        %v563 = vmul.f32 %v557, 0.03125
        %v564 = vmul.f32 %v559, 0.03125
        %v565 = vmul.f32 %v561, 0.03125
        %v566 = vadd.f32 %v562, 1e-05
        %v567 = vadd.f32 %v563, 1e-05
        %v568 = vadd.f32 %v564, 1e-05
        %v569 = vadd.f32 %v565, 1e-05
        %v570 = vrsqrt.pop %v566
        %v571 = vrsqrt.pop %v567
        %v572 = vrsqrt.pop %v568
        %v573 = vrsqrt.pop %v569
        %v574 = vmul.f32 %v546, %v570
        %v575 = vmul.f32 %v547, %v571
        %v576 = vmul.f32 %v548, %v572
        %v577 = vmul.f32 %v549, %v573
        %v578 = vmax.f32 %v574, 0.0
        %v579 = vmax.f32 %v575, 0.0
        %v580 = vmax.f32 %v576, 0.0
        %v581 = vmax.f32 %v577, 0.0
        %v582 = vpack.c.bf16 %v579, %v578
        %v583 = vpack.c.bf16 %v581, %v580
        %v584 = vld [vmem:[%s4] sm:$0xf]
        %v585 = vld [vmem:[%s4 + $0x4] sm:$0xf]
        %v586 = vld [vmem:[%s4 + $0x8] sm:$0xf]
        %v587 = vld [vmem:[%s4 + $0xc] sm:$0xf]
        %v588 = vld [vmem:[%s4 + $0x10] sm:$0xf]
        %v589 = vld [vmem:[%s4 + $0x14] sm:$0xf]
        %v590 = vld [vmem:[%s4 + $0x18] sm:$0xf]
        %v591 = vld [vmem:[%s4 + $0x1c] sm:$0xf]
        %v592 = vld [vmem:[%s4 + $0x20] sm:$0xf]
        %v593 = vld [vmem:[%s4 + $0x24] sm:$0xf]
        %v594 = vld [vmem:[%s4 + $0x28] sm:$0xf]
        %v595 = vld [vmem:[%s4 + $0x2c] sm:$0xf]
        %v596 = vld [vmem:[%s4 + $0x30] sm:$0xf]
        %v597 = vld [vmem:[%s4 + $0x34] sm:$0xf]
        %v598 = vld [vmem:[%s4 + $0x38] sm:$0xf]
        %v599 = vld [vmem:[%s4 + $0x3c] sm:$0xf]
        %v600 = vld [vmem:[%s5] sm:$0x1]
        %v602 = vlaneseq
        %v603 = vshrl.u32 %v602, 7
        %v604 = vsub.s32 0, %v603
        %v605 = vrot.slane %v600, %v604
        %v623 = vunpack.c.l.b16 %v584
        %v624 = vunpack.c.l.b16 %v585
        %v625 = vunpack.c.l.b16 %v586
        %v626 = vunpack.c.l.b16 %v587
        %v627 = vunpack.c.l.b16 %v588
        %v628 = vunpack.c.l.b16 %v589
        %v629 = vunpack.c.l.b16 %v590
        %v630 = vunpack.c.l.b16 %v591
        %v631 = vunpack.c.l.b16 %v592
        %v632 = vunpack.c.l.b16 %v593
        %v633 = vunpack.c.l.b16 %v594
        %v634 = vunpack.c.l.b16 %v595
        %v635 = vunpack.c.l.b16 %v596
        %v636 = vunpack.c.l.b16 %v597
        %v637 = vunpack.c.l.b16 %v598
        %v638 = vunpack.c.l.b16 %v599
        %v639 = vpack.c.b16 %v624, %v623
        %v640 = vpack.c.b16 %v626, %v625
        %v641 = vpack.c.b16 %v628, %v627
        %v642 = vpack.c.b16 %v630, %v629
        %v643 = vpack.c.b16 %v632, %v631
        %v644 = vpack.c.b16 %v634, %v633
        %v645 = vpack.c.b16 %v636, %v635
        %v646 = vpack.c.b16 %v638, %v637
        %655 = vmatprep.subr.bf16.mxu0 0
        %656 = vmatpush1.bf16.msra.mxu0 %v646
        %657 = vmatprep.subr.bf16.mxu0 0
        %658 = vmatpush1.bf16.msra.mxu0 %v645
        %659 = vmatprep.subr.bf16.mxu0 0
        %660 = vmatpush1.bf16.msra.mxu0 %v644
        %661 = vmatprep.subr.bf16.mxu0 0
        %662 = vmatpush1.bf16.msra.mxu0 %v643
        %663 = vmatprep.subr.bf16.mxu0 0
        %664 = vmatpush1.bf16.msra.mxu0 %v642
        %665 = vmatprep.subr.bf16.mxu0 0
        %666 = vmatpush1.bf16.msra.mxu0 %v641
        %667 = vmatprep.subr.bf16.mxu0 0
        %668 = vmatpush1.bf16.msra.mxu0 %v640
        %669 = vmatprep.subr.bf16.mxu0 0
        %670 = vmatpush1.bf16.msra.mxu0 %v639
        %671 = vmatprep.subr.bf16.mxu0 0
        %672 = vmatpush2.bf16.msra.mxu0 0
        %673 = vmatprep.subr.bf16.mxu0 0
        %674 = vmatpush2.bf16.msra.mxu0 0
        %675 = vmatprep.subr.bf16.mxu0 0
        %676 = vmatpush2.bf16.msra.mxu0 0
        %677 = vmatprep.subr.bf16.mxu0 0
        %678 = vmatpush2.bf16.msra.mxu0 0
        %679 = vmatprep.subr.bf16.mxu0 0
        %680 = vmatpush2.bf16.msra.mxu0 0
        %681 = vmatprep.subr.bf16.mxu0 0
        %682 = vmatpush2.bf16.msra.mxu0 0
        %683 = vmatprep.subr.bf16.mxu0 0
        %684 = vmatpush2.bf16.msra.mxu0 0
        %685 = vmatprep.subr.bf16.mxu0 0
        %686 = vmatpush2.bf16.msra.mxu0 0
        %687 = vmatprep.mubr.bf16.mxu0 0
        %688 = vmatmul.mubr.bf16.gmra.mxu0 %v582
        %v689 = vpop.f32.mrf.mxu0
        %v690 = vadd.f32 %v605, %v689
        %v691 = vpop.f32.mrf.mxu0
        %v692 = vpop.f32.mrf.mxu0
        %v693 = vadd.f32 %v605, %v692
        %v694 = vpop.f32.mrf.mxu0
        %695 = vmatprep.mubr.bf16.mxu0 0
        %696 = vmatmul.mubr.bf16.gmra.mxu0 %v583
        %v697 = vpop.f32.mrf.mxu0
        %v698 = vadd.f32 %v605, %v697
        %v699 = vpop.f32.mrf.mxu0
        %v700 = vpop.f32.mrf.mxu0
        %v701 = vadd.f32 %v605, %v700
        %v702 = vpop.f32.mrf.mxu0
        %703 = vdwg.mxu0
        %704 = vadd.xlane.f32.xlu0 %v690
        %v705 = vpop.xlane.xlu0 %704
        %706 = vadd.xlane.f32.xlu0 %v693
        %v707 = vpop.xlane.xlu0 %706
        %708 = vadd.xlane.f32.xlu0 %v698
        %v709 = vpop.xlane.xlu0 %708
        %710 = vadd.xlane.f32.xlu0 %v701
        %v711 = vpop.xlane.xlu0 %710
        %v712 = vmul.f32 %v705, 0.03125
        %v713 = vmul.f32 %v707, 0.03125
        %v714 = vmul.f32 %v709, 0.03125
        %v715 = vmul.f32 %v711, 0.03125
        %v716 = vsub.f32 %v690, %v712
        %v717 = vsub.f32 %v693, %v713
        %v718 = vsub.f32 %v698, %v714
        %v719 = vsub.f32 %v701, %v715
        %v720 = vsel %vm450, %v716, 0.0
        %v721 = vsel %vm450, %v717, 0.0
        %v722 = vsel %vm450, %v718, 0.0
        %v723 = vsel %vm450, %v719, 0.0
        %v724 = vmul.f32 %v720, %v720
        %v725 = vmul.f32 %v721, %v721
        %v726 = vmul.f32 %v722, %v722
        %v727 = vmul.f32 %v723, %v723
        %728 = vadd.xlane.f32.xlu0 %v724
        %v729 = vpop.xlane.xlu0 %728
        %730 = vadd.xlane.f32.xlu0 %v725
        %v731 = vpop.xlane.xlu0 %730
        %732 = vadd.xlane.f32.xlu0 %v726
        %v733 = vpop.xlane.xlu0 %732
        %734 = vadd.xlane.f32.xlu0 %v727
        %v735 = vpop.xlane.xlu0 %734
        %v736 = vmul.f32 %v729, 0.03125
        %v737 = vmul.f32 %v731, 0.03125
        %v738 = vmul.f32 %v733, 0.03125
        %v739 = vmul.f32 %v735, 0.03125
        %v740 = vadd.f32 %v736, 1e-05
        %v741 = vadd.f32 %v737, 1e-05
        %v742 = vadd.f32 %v738, 1e-05
        %v743 = vadd.f32 %v739, 1e-05
        %v744 = vrsqrt.pop %v740
        %v745 = vrsqrt.pop %v741
        %v746 = vrsqrt.pop %v742
        %v747 = vrsqrt.pop %v743
        %v748 = vmul.f32 %v720, %v744
        %v749 = vmul.f32 %v721, %v745
        %v750 = vmul.f32 %v722, %v746
        %v751 = vmul.f32 %v723, %v747
        %v752 = vmax.f32 %v748, 0.0
        %v753 = vmax.f32 %v749, 0.0
        %v754 = vmax.f32 %v750, 0.0
        %v755 = vmax.f32 %v751, 0.0
        %v756 = vpack.c.bf16 %v753, %v752
        %v757 = vpack.c.bf16 %v755, %v754
        %v758 = vld [vmem:[%s6] sm:$0xf]
        %v759 = vld [vmem:[%s6 + $0x4] sm:$0xf]
        %v760 = vld [vmem:[%s6 + $0x8] sm:$0xf]
        %v761 = vld [vmem:[%s6 + $0xc] sm:$0xf]
        %v762 = vld [vmem:[%s6 + $0x10] sm:$0xf]
        %v763 = vld [vmem:[%s6 + $0x14] sm:$0xf]
        %v764 = vld [vmem:[%s6 + $0x18] sm:$0xf]
        %v765 = vld [vmem:[%s6 + $0x1c] sm:$0xf]
        %v766 = vld [vmem:[%s6 + $0x20] sm:$0xf]
        %v767 = vld [vmem:[%s6 + $0x24] sm:$0xf]
        %v768 = vld [vmem:[%s6 + $0x28] sm:$0xf]
        %v769 = vld [vmem:[%s6 + $0x2c] sm:$0xf]
        %v770 = vld [vmem:[%s6 + $0x30] sm:$0xf]
        %v771 = vld [vmem:[%s6 + $0x34] sm:$0xf]
        %v772 = vld [vmem:[%s6 + $0x38] sm:$0xf]
        %v773 = vld [vmem:[%s6 + $0x3c] sm:$0xf]
        %v774 = vld [vmem:[%s7] sm:$0x1]
        %v776 = vlaneseq
        %v777 = vshrl.u32 %v776, 7
        %v778 = vsub.s32 0, %v777
        %v779 = vrot.slane %v774, %v778
        %v797 = vunpack.c.l.b16 %v758
        %v798 = vunpack.c.l.b16 %v759
        %v799 = vunpack.c.l.b16 %v760
        %v800 = vunpack.c.l.b16 %v761
        %v801 = vunpack.c.l.b16 %v762
        %v802 = vunpack.c.l.b16 %v763
        %v803 = vunpack.c.l.b16 %v764
        %v804 = vunpack.c.l.b16 %v765
        %v805 = vunpack.c.l.b16 %v766
        %v806 = vunpack.c.l.b16 %v767
        %v807 = vunpack.c.l.b16 %v768
        %v808 = vunpack.c.l.b16 %v769
        %v809 = vunpack.c.l.b16 %v770
        %v810 = vunpack.c.l.b16 %v771
        %v811 = vunpack.c.l.b16 %v772
        %v812 = vunpack.c.l.b16 %v773
        %v813 = vpack.c.b16 %v798, %v797
        %v814 = vpack.c.b16 %v800, %v799
        %v815 = vpack.c.b16 %v802, %v801
        %v816 = vpack.c.b16 %v804, %v803
        %v817 = vpack.c.b16 %v806, %v805
        %v818 = vpack.c.b16 %v808, %v807
        %v819 = vpack.c.b16 %v810, %v809
        %v820 = vpack.c.b16 %v812, %v811
        %829 = vmatprep.subr.bf16.mxu0 0
        %830 = vmatpush1.bf16.msra.mxu0 %v820
        %831 = vmatprep.subr.bf16.mxu0 0
        %832 = vmatpush1.bf16.msra.mxu0 %v819
        %833 = vmatprep.subr.bf16.mxu0 0
        %834 = vmatpush1.bf16.msra.mxu0 %v818
        %835 = vmatprep.subr.bf16.mxu0 0
        %836 = vmatpush1.bf16.msra.mxu0 %v817
        %837 = vmatprep.subr.bf16.mxu0 0
        %838 = vmatpush1.bf16.msra.mxu0 %v816
        %839 = vmatprep.subr.bf16.mxu0 0
        %840 = vmatpush1.bf16.msra.mxu0 %v815
        %841 = vmatprep.subr.bf16.mxu0 0
        %842 = vmatpush1.bf16.msra.mxu0 %v814
        %843 = vmatprep.subr.bf16.mxu0 0
        %844 = vmatpush1.bf16.msra.mxu0 %v813
        %845 = vmatprep.subr.bf16.mxu0 0
        %846 = vmatpush2.bf16.msra.mxu0 0
        %847 = vmatprep.subr.bf16.mxu0 0
        %848 = vmatpush2.bf16.msra.mxu0 0
        %849 = vmatprep.subr.bf16.mxu0 0
        %850 = vmatpush2.bf16.msra.mxu0 0
        %851 = vmatprep.subr.bf16.mxu0 0
        %852 = vmatpush2.bf16.msra.mxu0 0
        %853 = vmatprep.subr.bf16.mxu0 0
        %854 = vmatpush2.bf16.msra.mxu0 0
        %855 = vmatprep.subr.bf16.mxu0 0
        %856 = vmatpush2.bf16.msra.mxu0 0
        %857 = vmatprep.subr.bf16.mxu0 0
        %858 = vmatpush2.bf16.msra.mxu0 0
        %859 = vmatprep.subr.bf16.mxu0 0
        %860 = vmatpush2.bf16.msra.mxu0 0
        %861 = vmatprep.mubr.bf16.mxu0 0
        %862 = vmatmul.mubr.bf16.gmra.mxu0 %v756
        %v863 = vpop.f32.mrf.mxu0
        %v864 = vadd.f32 %v779, %v863
        %v865 = vpop.f32.mrf.mxu0
        %v866 = vpop.f32.mrf.mxu0
        %v867 = vadd.f32 %v779, %v866
        %v868 = vpop.f32.mrf.mxu0
        %869 = vmatprep.mubr.bf16.mxu0 0
        %870 = vmatmul.mubr.bf16.gmra.mxu0 %v757
        %v871 = vpop.f32.mrf.mxu0
        %v872 = vadd.f32 %v779, %v871
        %v873 = vpop.f32.mrf.mxu0
        %v874 = vpop.f32.mrf.mxu0
        %v875 = vadd.f32 %v779, %v874
        %v876 = vpop.f32.mrf.mxu0
        %877 = vdwg.mxu0
        %878 = vadd.xlane.f32.xlu0 %v864
        %v879 = vpop.xlane.xlu0 %878
        %880 = vadd.xlane.f32.xlu0 %v867
        %v881 = vpop.xlane.xlu0 %880
        %882 = vadd.xlane.f32.xlu0 %v872
        %v883 = vpop.xlane.xlu0 %882
        %884 = vadd.xlane.f32.xlu0 %v875
        %v885 = vpop.xlane.xlu0 %884
        %v886 = vmul.f32 %v879, 0.03125
        %v887 = vmul.f32 %v881, 0.03125
        %v888 = vmul.f32 %v883, 0.03125
        %v889 = vmul.f32 %v885, 0.03125
        %v890 = vsub.f32 %v864, %v886
        %v891 = vsub.f32 %v867, %v887
        %v892 = vsub.f32 %v872, %v888
        %v893 = vsub.f32 %v875, %v889
        %v894 = vsel %vm450, %v890, 0.0
        %v895 = vsel %vm450, %v891, 0.0
        %v896 = vsel %vm450, %v892, 0.0
        %v897 = vsel %vm450, %v893, 0.0
        %v898 = vmul.f32 %v894, %v894
        %v899 = vmul.f32 %v895, %v895
        %v900 = vmul.f32 %v896, %v896
        %v901 = vmul.f32 %v897, %v897
        %902 = vadd.xlane.f32.xlu0 %v898
        %v903 = vpop.xlane.xlu0 %902
        %904 = vadd.xlane.f32.xlu0 %v899
        %v905 = vpop.xlane.xlu0 %904
        %906 = vadd.xlane.f32.xlu0 %v900
        %v907 = vpop.xlane.xlu0 %906
        %908 = vadd.xlane.f32.xlu0 %v901
        %v909 = vpop.xlane.xlu0 %908
        %v910 = vmul.f32 %v903, 0.03125
        %v911 = vmul.f32 %v905, 0.03125
        %v912 = vmul.f32 %v907, 0.03125
        %v913 = vmul.f32 %v909, 0.03125
        %v914 = vadd.f32 %v910, 1e-05
        %v915 = vadd.f32 %v911, 1e-05
        %v916 = vadd.f32 %v912, 1e-05
        %v917 = vadd.f32 %v913, 1e-05
        %v918 = vrsqrt.pop %v914
        %v919 = vrsqrt.pop %v915
        %v920 = vrsqrt.pop %v916
        %v921 = vrsqrt.pop %v917
        %v922 = vmul.f32 %v894, %v918
        %v923 = vmul.f32 %v895, %v919
        %v924 = vmul.f32 %v896, %v920
        %v925 = vmul.f32 %v897, %v921
        %v926 = vmax.f32 %v922, 0.0
        %v927 = vmax.f32 %v923, 0.0
        %v928 = vmax.f32 %v924, 0.0
        %v929 = vmax.f32 %v925, 0.0
        %v930 = vpack.c.bf16 %v927, %v926
        %v931 = vpack.c.bf16 %v929, %v928
        %v932 = vld [vmem:[%s8] sm:$0xf]
        %v933 = vld [vmem:[%s8 + $0x4] sm:$0xf]
        %v934 = vld [vmem:[%s8 + $0x8] sm:$0xf]
        %v935 = vld [vmem:[%s8 + $0xc] sm:$0xf]
        %v936 = vld [vmem:[%s8 + $0x10] sm:$0xf]
        %v937 = vld [vmem:[%s8 + $0x14] sm:$0xf]
        %v938 = vld [vmem:[%s8 + $0x18] sm:$0xf]
        %v939 = vld [vmem:[%s8 + $0x1c] sm:$0xf]
        %v940 = vld [vmem:[%s8 + $0x20] sm:$0xf]
        %v941 = vld [vmem:[%s8 + $0x24] sm:$0xf]
        %v942 = vld [vmem:[%s8 + $0x28] sm:$0xf]
        %v943 = vld [vmem:[%s8 + $0x2c] sm:$0xf]
        %v944 = vld [vmem:[%s8 + $0x30] sm:$0xf]
        %v945 = vld [vmem:[%s8 + $0x34] sm:$0xf]
        %v946 = vld [vmem:[%s8 + $0x38] sm:$0xf]
        %v947 = vld [vmem:[%s8 + $0x3c] sm:$0xf]
        %v948 = vld [vmem:[%s9] sm:$0x1]
        %v950 = vlaneseq
        %v951 = vshrl.u32 %v950, 7
        %v952 = vsub.s32 0, %v951
        %v953 = vrot.slane %v948, %v952
        %v971 = vunpack.c.l.b16 %v932
        %v972 = vunpack.c.l.b16 %v933
        %v973 = vunpack.c.l.b16 %v934
        %v974 = vunpack.c.l.b16 %v935
        %v975 = vunpack.c.l.b16 %v936
        %v976 = vunpack.c.l.b16 %v937
        %v977 = vunpack.c.l.b16 %v938
        %v978 = vunpack.c.l.b16 %v939
        %v979 = vunpack.c.l.b16 %v940
        %v980 = vunpack.c.l.b16 %v941
        %v981 = vunpack.c.l.b16 %v942
        %v982 = vunpack.c.l.b16 %v943
        %v983 = vunpack.c.l.b16 %v944
        %v984 = vunpack.c.l.b16 %v945
        %v985 = vunpack.c.l.b16 %v946
        %v986 = vunpack.c.l.b16 %v947
        %v987 = vpack.c.b16 %v972, %v971
        %v988 = vpack.c.b16 %v974, %v973
        %v989 = vpack.c.b16 %v976, %v975
        %v990 = vpack.c.b16 %v978, %v977
        %v991 = vpack.c.b16 %v980, %v979
        %v992 = vpack.c.b16 %v982, %v981
        %v993 = vpack.c.b16 %v984, %v983
        %v994 = vpack.c.b16 %v986, %v985
        %1003 = vmatprep.subr.bf16.mxu0 0
        %1004 = vmatpush1.bf16.msra.mxu0 %v994
        %1005 = vmatprep.subr.bf16.mxu0 0
        %1006 = vmatpush1.bf16.msra.mxu0 %v993
        %1007 = vmatprep.subr.bf16.mxu0 0
        %1008 = vmatpush1.bf16.msra.mxu0 %v992
        %1009 = vmatprep.subr.bf16.mxu0 0
        %1010 = vmatpush1.bf16.msra.mxu0 %v991
        %1011 = vmatprep.subr.bf16.mxu0 0
        %1012 = vmatpush1.bf16.msra.mxu0 %v990
        %1013 = vmatprep.subr.bf16.mxu0 0
        %1014 = vmatpush1.bf16.msra.mxu0 %v989
        %1015 = vmatprep.subr.bf16.mxu0 0
        %1016 = vmatpush1.bf16.msra.mxu0 %v988
        %1017 = vmatprep.subr.bf16.mxu0 0
        %1018 = vmatpush1.bf16.msra.mxu0 %v987
        %1019 = vmatprep.subr.bf16.mxu0 0
        %1020 = vmatpush2.bf16.msra.mxu0 0
        %1021 = vmatprep.subr.bf16.mxu0 0
        %1022 = vmatpush2.bf16.msra.mxu0 0
        %1023 = vmatprep.subr.bf16.mxu0 0
        %1024 = vmatpush2.bf16.msra.mxu0 0
        %1025 = vmatprep.subr.bf16.mxu0 0
        %1026 = vmatpush2.bf16.msra.mxu0 0
        %1027 = vmatprep.subr.bf16.mxu0 0
        %1028 = vmatpush2.bf16.msra.mxu0 0
        %1029 = vmatprep.subr.bf16.mxu0 0
        %1030 = vmatpush2.bf16.msra.mxu0 0
        %1031 = vmatprep.subr.bf16.mxu0 0
        %1032 = vmatpush2.bf16.msra.mxu0 0
        %1033 = vmatprep.subr.bf16.mxu0 0
        %1034 = vmatpush2.bf16.msra.mxu0 0
        %1035 = vmatprep.mubr.bf16.mxu0 0
        %1036 = vmatmul.mubr.bf16.gmra.mxu0 %v930
        %v1037 = vpop.f32.mrf.mxu0
        %v1038 = vadd.f32 %v953, %v1037
        %v1039 = vpop.f32.mrf.mxu0
        %v1040 = vpop.f32.mrf.mxu0
        %v1041 = vadd.f32 %v953, %v1040
        %v1042 = vpop.f32.mrf.mxu0
        %1043 = vmatprep.mubr.bf16.mxu0 0
        %1044 = vmatmul.mubr.bf16.gmra.mxu0 %v931
        %v1045 = vpop.f32.mrf.mxu0
        %v1046 = vadd.f32 %v953, %v1045
        %v1047 = vpop.f32.mrf.mxu0
        %v1048 = vpop.f32.mrf.mxu0
        %v1049 = vadd.f32 %v953, %v1048
        %v1050 = vpop.f32.mrf.mxu0
        %1051 = vdwg.mxu0
        %v1052 = vsub.f32 0.0, %v1038
        %v1053 = vsub.f32 0.0, %v1041
        %v1054 = vsub.f32 0.0, %v1046
        %v1055 = vsub.f32 0.0, %v1049
        %v1056 = vmul.f32 %v1052, 1.442695
        %v1057 = vpow.pop %v1056
        %v1058 = vmul.f32 %v1053, 1.442695
        %v1059 = vpow.pop %v1058
        %v1060 = vmul.f32 %v1054, 1.442695
        %v1061 = vpow.pop %v1060
        %v1062 = vmul.f32 %v1055, 1.442695
        %v1063 = vpow.pop %v1062
        %v1064 = vadd.f32 %v1057, 1.0
        %v1065 = vadd.f32 %v1059, 1.0
        %v1066 = vadd.f32 %v1061, 1.0
        %v1067 = vadd.f32 %v1063, 1.0
        %v1068 = vrcp.pop %v1064
        %v1069 = vmul.f32 1.0, %v1068
        %v1070 = vrcp.pop %v1065
        %v1071 = vmul.f32 1.0, %v1070
        %v1072 = vrcp.pop %v1066
        %v1073 = vmul.f32 1.0, %v1072
        %v1074 = vrcp.pop %v1067
        %v1075 = vmul.f32 1.0, %v1074
        %1076 = vst [vmem:[%s439] sm:$0xff] %v1069
        %1077 = vst [vmem:[%s439 + $0x8] sm:$0xff] %v1071
        %1078 = vst [vmem:[%s439 + $0x10] sm:$0xff] %v1073
        %1079 = vst [vmem:[%s439 + $0x18] sm:$0xff] %v1075
        %v1080 = vld [vmem:[%s427] sm:$0xff]
        %v1081 = vld [vmem:[%s427 + $0x8] sm:$0xff]
        %v1082 = vld [vmem:[%s427 + $0x10] sm:$0xff]
        %v1083 = vld [vmem:[%s427 + $0x18] sm:$0xff]
        %vm1084 = vcmp.lt.f32.partialorder %v1080, %v1069
        %vm1085 = vcmp.lt.f32.partialorder %v1081, %v1071
        %vm1086 = vcmp.lt.f32.partialorder %v1082, %v1073
        %vm1087 = vcmp.lt.f32.partialorder %v1083, %v1075
        %v1088 = vsel %vm1084, 1.0, 0.0
        %v1089 = vsel %vm1085, 1.0, 0.0
        %v1090 = vsel %vm1086, 1.0, 0.0
        %v1091 = vsel %vm1087, 1.0, 0.0
        %1092 = vst [vmem:[%s433] sm:$0xff] %v1088
        %1093 = vst [vmem:[%s433 + $0x8] sm:$0xff] %v1089
        %1094 = vst [vmem:[%s433 + $0x10] sm:$0xff] %v1090
        %1095 = vst [vmem:[%s433 + $0x18] sm:$0xff] %v1091
        %s1096 = smul.u32 4, %s24
        %p1097 = scmp.lt.s32.totalorder %s1096, 7
        %s1098 = scalar_select %p1097, %s1096, 7
        %s1099 = smul.addr %s1098, 8
        %s1100 = scalar_lea.vmem %s10, %s1099
        %s1101 = smul.u32 4, %s24
        %p1102 = scmp.lt.s32.totalorder %s1101, 7
        %s1103 = scalar_select %p1102, %s1101, 7
        %s1104 = smul.addr %s1103, 8
        %s1105 = scalar_lea.vmem %s11, %s1104
        // Predicated region
        $region65: #{_masknet_forward_jit.1} parent=59 // pred_check
          %p1106 = pneg %p262
        $region66: #{_masknet_forward_jit.1} parent=59 // pred_check_branch
          %1108 = sbr.rel (%p1106) target = $region68
        $region67: #{_masknet_forward_jit.1} parent=59 // pred_region
          %s1109 = smul.u32 4, %s24
        $region68: #{_masknet_forward_jit.1} parent=59 // pred_fallthru
          _
        // Predicated region
        $region69: #{_masknet_forward_jit.1} parent=59 // pred_check
          %p1110 = pneg %p288
        $region70: #{_masknet_forward_jit.1} parent=59 // pred_check_branch
          %1112 = sbr.rel (%p1110) target = $region72
        $region71: #{_masknet_forward_jit.1} parent=59 // pred_region
          %s1113 = smul.u32 4, %s24
        $region72: #{_masknet_forward_jit.1} parent=59 // pred_fallthru
          _
      $region60: #{_masknet_forward_jit.1} parent=5 // pred_fallthru
        _
      %p1114 = scmp.le.s32.totalorder 2, %s19
      // Predicated region
      $region73: #{_masknet_forward_jit.1} parent=5 // pred_check
        %p1115 = pneg %p1114
      $region74: #{_masknet_forward_jit.1} parent=5 // pred_check_branch
        %1117 = sbr.rel (%p1115) target = $region76
      $region75: #{_masknet_forward_jit.1} parent=5 // pred_region
        %s1118 = ssub.s32 %s19, 2
        // Predicated region
        $region77: #{_masknet_forward_jit.1} parent=75 // pred_check
          %p1119 = pneg %p268
        $region78: #{_masknet_forward_jit.1} parent=75 // pred_check_branch
          %1121 = sbr.rel (%p1119) target = $region80
        $region79: #{_masknet_forward_jit.1} parent=75 // pred_region
          %s1122 = smul.u32 4, %s25
          %p1123 = scmp.lt.s32.totalorder %s1122, 7
          %s1124 = scalar_select %p1123, %s1122, 7
          %s1125 = smul.addr %s1124, 8
          %s1126 = scalar_lea.vmem %s10, %s1125
        $region80: #{_masknet_forward_jit.1} parent=75 // pred_fallthru
          _
        // Predicated region
        $region81: #{_masknet_forward_jit.1} parent=75 // pred_check
          %p1127 = pneg %p294
        $region82: #{_masknet_forward_jit.1} parent=75 // pred_check_branch
          %1129 = sbr.rel (%p1127) target = $region84
        $region83: #{_masknet_forward_jit.1} parent=75 // pred_region
          %s1130 = smul.u32 4, %s25
          %p1131 = scmp.lt.s32.totalorder %s1130, 7
          %s1132 = scalar_select %p1131, %s1130, 7
          %s1133 = smul.addr %s1132, 8
          %s1134 = scalar_lea.vmem %s11, %s1133
        $region84: #{_masknet_forward_jit.1} parent=75 // pred_fallthru
          _
      $region76: #{_masknet_forward_jit.1} parent=5 // pred_fallthru
        _
    $region6: #{_masknet_forward_jit.1} parent=1 // loop_footer
      %s23 = sadd.s32 1, %s19
    $region7: #{_masknet_forward_jit.1} parent=1 // loop_footer_branch
      %18 = sbr.rel target = $region3
    $region8: #{_masknet_forward_jit.1} parent=1 // loop_exit
      _
    %1135 = vsyncpa [#allocation3], 1
    %s1136 = scalar_lea.sflag [#allocation3], 1
    %1137 = vsyncpa %s1136, 1

</llo_original>
